<compile_context>
chip_gen: v7x
topology: tpu7x:2x2x1
jax: 0.10.0
libtpu: 0.0.40
codegen_flags: <defaults>
</compile_context>

<pallas_src>
import functools

import jax
import jax.numpy as jnp
from jax.experimental import pallas as pl
from jax.experimental.pallas import tpu as pltpu

_LANE = 128
_BLOCK_ROWS = 1024     # up to 512 KiB f32 per input block
_MAX_PARALLEL = 8      # outer ("parallel") grid extent cap


def _mse_partial_kernel(a_ref, b_ref, out_ref, acc_ref, *,
                        inner_steps, block_rows, valid_rows):
    p = pl.program_id(0)
    t = pl.program_id(1)

    @pl.when(t == 0)
    def _():
        acc_ref[...] = jnp.zeros_like(acc_ref)

    # Global row index of every element in this block; masks both the ragged
    # tail of the array and fully-redundant (clamped) grid steps.
    row_start = (p * inner_steps + t) * block_rows
    row_ids = row_start + jax.lax.broadcasted_iota(jnp.int32, acc_ref.shape, 0)
    mask = row_ids < valid_rows

    d = a_ref[...].astype(jnp.float32) - b_ref[...].astype(jnp.float32)
    acc_ref[...] += jnp.where(mask, d * d, 0.0)

    @pl.when(t == inner_steps - 1)
    def _():
        # One cross-sublane reduce per outer index (not per step).
        out_ref[...] = jnp.sum(acc_ref[...], axis=0, keepdims=True)


def recon_loss(rec0, rec1, *, block_rows=_BLOCK_ROWS, max_parallel=_MAX_PARALLEL):
    """MSE(rec0, rec1) == torch.nn.MSELoss()(Rec[0], Rec[1])."""
    assert rec0.shape == rec1.shape, (rec0.shape, rec1.shape)
    assert rec0.dtype == rec1.dtype, (rec0.dtype, rec1.dtype)
    n = rec0.size  # true element count (mean denominator)

    a = rec0.reshape(-1)
    b = rec1.reshape(-1)

    tail = (-n) % _LANE
    if tail:
        # Correctness fallback for numel % 128 != 0: tiny zero pad (equal
        # padded values contribute 0 to the sum of squared differences).
        a = jnp.pad(a, (0, tail))
        b = jnp.pad(b, (0, tail))

    rows = a.size // _LANE
    a2 = a.reshape(rows, _LANE)
    b2 = b.reshape(rows, _LANE)

    # Block rows: big for large inputs, exactly the array for small ones
    # (block dim equal to full array dim is always legal).
    br = min(block_rows, rows)
    num_blocks = pl.cdiv(rows, br)

    # 2-D grid: outer "parallel" axis (v7x dual TensorCore), inner "arbitrary"
    # reduction axis.  Shrink the outer axis so wasted (clamped) steps <= 1
    # per outer index.
    p_axis = min(max_parallel, num_blocks)
    t_axis = pl.cdiv(num_blocks, p_axis)
    p_axis = pl.cdiv(num_blocks, t_axis)

    def in_map(p, t):
        # Clamp so redundant trailing steps re-read the last block; the row
        # mask in the kernel zeroes their contribution.
        return (jnp.minimum(p * t_axis + t, num_blocks - 1), 0)

    kernel = functools.partial(
        _mse_partial_kernel,
        inner_steps=t_axis,
        block_rows=br,
        valid_rows=rows,
    )

    itemsize = jnp.dtype(rec0.dtype).itemsize
    cost = pl.CostEstimate(
        flops=3 * n,
        transcendentals=0,
        bytes_accessed=2 * n * itemsize + p_axis * _LANE * 4,
    )

    partials = pl.pallas_call(
        kernel,
        out_shape=jax.ShapeDtypeStruct((p_axis, _LANE), jnp.float32),
        grid_spec=pltpu.PrefetchScalarGridSpec(
            num_scalar_prefetch=0,
            grid=(p_axis, t_axis),
            in_specs=[
                pl.BlockSpec((br, _LANE), in_map),
                pl.BlockSpec((br, _LANE), in_map),
            ],
            out_specs=pl.BlockSpec((1, _LANE), lambda p, t: (p, 0)),
            scratch_shapes=[pltpu.VMEM((br, _LANE), jnp.float32)],
        ),
        compiler_params=pltpu.CompilerParams(
            dimension_semantics=("parallel", "arbitrary"),
        ),
        cost_estimate=cost,
    )(a2, b2)

    # Raw sum in-kernel; scale by 1/n here (keeps kernel reusable, one masked
    # store total anyway).
    return jnp.sum(partials) / jnp.float32(n)


def _ref_mse(x0, x1):
    x0 = x0.astype(jnp.float32)
    x1 = x1.astype(jnp.float32)
    return jnp.mean((x0 - x1) ** 2)


if __name__ == "__main__":
    key = jax.random.PRNGKey(0)
    k0, k1, k2, k3, k4, k5 = jax.random.split(key, 6)

    # 1) Main path: NCHW reconstruction pair, numel multiple of 128, f32.
    x0 = jax.random.normal(k0, (2, 4, 16, 16), dtype=jnp.float32)
    x1 = jax.random.normal(k1, (2, 4, 16, 16), dtype=jnp.float32)
    loss = recon_loss(x0, x1)
    jax.block_until_ready(loss)
    assert jnp.allclose(loss, _ref_mse(x0, x1), rtol=1e-6, atol=1e-6), loss

    # 2) Ragged path: numel not a multiple of 128 (tiny pad fallback).
    y0 = jax.random.normal(k2, (2, 3, 15, 17), dtype=jnp.float32)
    y1 = jax.random.normal(k3, (2, 3, 15, 17), dtype=jnp.float32)
    loss_y = recon_loss(y0, y1)
    jax.block_until_ready(loss_y)
    assert jnp.allclose(loss_y, _ref_mse(y0, y1), rtol=1e-5, atol=1e-6), loss_y

    # 3) Multi-block grid with a partial last block and clamped redundant
    #    steps (small block_rows override to exercise the 2-D grid).
    z0 = jax.random.normal(k4, (2, 9, 60, 128), dtype=jnp.float32)
    z1 = jax.random.normal(k5, (2, 9, 60, 128), dtype=jnp.float32)
    loss_z = recon_loss(z0, z1, block_rows=128)
    jax.block_until_ready(loss_z)
    assert jnp.allclose(loss_z, _ref_mse(z0, z1), rtol=1e-5, atol=1e-6), loss_z

    # 4) bf16 inputs: no wrapper cast, f32 accumulation in-kernel.
    b0 = x0.astype(jnp.bfloat16)
    b1 = x1.astype(jnp.bfloat16)
    loss_b = recon_loss(b0, b1)
    jax.block_until_ready(loss_b)
    assert jnp.allclose(loss_b, _ref_mse(b0, b1), rtol=1e-3, atol=1e-4), loss_b

    print("KERNEL_OK")
</pallas_src>

<mosaic_0001>
module attributes {stable_mosaic.version = 11 : i64} {
  func.func @_mse_partial_kernel(%arg0: i32, %arg1: i32, %arg2: memref<16x128xf32, #tpu.memory_space<vmem>>, %arg3: memref<16x128xf32, #tpu.memory_space<vmem>>, %arg4: memref<1x128xf32, #tpu.memory_space<vmem>>, %arg5: memref<16x128xf32, #tpu.memory_space<vmem>>) attributes {dimension_semantics = [#tpu.dimension_semantics<parallel>, #tpu.dimension_semantics<arbitrary>], iteration_bounds = array<i64: 1, 1>, scalar_prefetch = 0 : i64, scratch_operands = 1 : i64, tpu.core_type = #tpu.core_type<tc>, window_params = [{transform_indices = @transform_0, window_bounds = array<i64: 16, 128>}, {transform_indices = @transform_1, window_bounds = array<i64: 16, 128>}, {transform_indices = @transform_2, window_bounds = array<i64: 1, 128>}]} {
    %c0_i32 = arith.constant 0 : i32
    %0 = arith.cmpi eq, %arg1, %c0_i32 : i32
    %1 = arith.extui %0 : i1 to i32
    %c0_i32_0 = arith.constant 0 : i32
    %2 = arith.cmpi ne, %1, %c0_i32_0 : i32
    scf.if %2 {
      %cst_11 = arith.constant 0.000000e+00 : f32
      %23 = vector.broadcast %cst_11 : f32 to vector<16x128xf32>
      %c0_12 = arith.constant 0 : index
      %c0_13 = arith.constant 0 : index
      %24 = vector.load %arg5[%c0_12, %c0_13] : memref<16x128xf32, #tpu.memory_space<vmem>>, vector<16x128xf32>
      tpu.vector_store %arg5[%c0_12, %c0_13], %23 {strides = array<i32>} : memref<16x128xf32, #tpu.memory_space<vmem>>, vector<16x128xf32>,
    } else {
    }
    %c1_i32 = arith.constant 1 : i32
    %3 = arith.muli %arg0, %c1_i32 : i32
    %4 = arith.addi %3, %arg1 : i32
    %c16_i32 = arith.constant 16 : i32
    %5 = arith.muli %4, %c16_i32 : i32
    %6 = tpu.iota {dimensions = array<i32: 0>} : vector<16x128xi32>
    %7 = vector.broadcast %5 : i32 to vector<16x128xi32>
    %8 = arith.addi %7, %6 : vector<16x128xi32>
    %c16_i32_1 = arith.constant 16 : i32
    %9 = vector.broadcast %c16_i32_1 : i32 to vector<16x128xi32>
    %10 = arith.cmpi slt, %8, %9 : vector<16x128xi32>
    %c0 = arith.constant 0 : index
    %c0_2 = arith.constant 0 : index
    %11 = vector.load %arg2[%c0, %c0_2] : memref<16x128xf32, #tpu.memory_space<vmem>>, vector<16x128xf32>
    %c0_3 = arith.constant 0 : index
    %c0_4 = arith.constant 0 : index
    %12 = vector.load %arg3[%c0_3, %c0_4] : memref<16x128xf32, #tpu.memory_space<vmem>>, vector<16x128xf32>
    %13 = arith.subf %11, %12 : vector<16x128xf32>
    %c0_5 = arith.constant 0 : index
    %c0_6 = arith.constant 0 : index
    %14 = vector.load %arg5[%c0_5, %c0_6] : memref<16x128xf32, #tpu.memory_space<vmem>>, vector<16x128xf32>
    %15 = arith.mulf %13, %13 : vector<16x128xf32>
    %cst = arith.constant 0.000000e+00 : f32
    %16 = vector.broadcast %cst : f32 to vector<16x128xf32>
    %17 = arith.select %10, %15, %16 : vector<16x128xi1>, vector<16x128xf32>
    %18 = arith.addf %14, %17 : vector<16x128xf32>
    %c0_7 = arith.constant 0 : index
    %c0_8 = arith.constant 0 : index
    %19 = vector.load %arg5[%c0_7, %c0_8] : memref<16x128xf32, #tpu.memory_space<vmem>>, vector<16x128xf32>
    tpu.vector_store %arg5[%c0_7, %c0_8], %18 {strides = array<i32>} : memref<16x128xf32, #tpu.memory_space<vmem>>, vector<16x128xf32>,
    %c0_i32_9 = arith.constant 0 : i32
    %20 = arith.cmpi eq, %arg1, %c0_i32_9 : i32
    %21 = arith.extui %20 : i1 to i32
    %c0_i32_10 = arith.constant 0 : i32
    %22 = arith.cmpi ne, %21, %c0_i32_10 : i32
    scf.if %22 {
      %c0_11 = arith.constant 0 : index
      %c0_12 = arith.constant 0 : index
      %23 = vector.load %arg5[%c0_11, %c0_12] : memref<16x128xf32, #tpu.memory_space<vmem>>, vector<16x128xf32>
      %cst_13 = arith.constant dense<0.000000e+00> : vector<128xf32>
      %24 = vector.multi_reduction <add>, %23, %cst_13 [0] : vector<16x128xf32> to vector<128xf32>
      %25 = vector.shape_cast %24 : vector<128xf32> to vector<1x128xf32>
      %c0_14 = arith.constant 0 : index
      %c0_15 = arith.constant 0 : index
      %26 = vector.load %arg4[%c0_14, %c0_15] : memref<1x128xf32, #tpu.memory_space<vmem>>, vector<1x128xf32>
      tpu.vector_store %arg4[%c0_14, %c0_15], %25 {strides = array<i32>} : memref<1x128xf32, #tpu.memory_space<vmem>>, vector<1x128xf32>,
    } else {
    }
    return
  }
  func.func @transform_0(%arg0: i32, %arg1: i32) -> (i32, i32) {
    %c1_i32 = arith.constant 1 : i32
    %0 = arith.muli %arg0, %c1_i32 : i32
    %1 = arith.addi %0, %arg1 : i32
    %c0_i32 = arith.constant 0 : i32
    %2 = arith.minsi %1, %c0_i32 : i32
    %c0_i32_0 = arith.constant 0 : i32
    %c0_i32_1 = arith.constant 0 : i32
    return %2, %c0_i32_0 : i32, i32
  }
  func.func @transform_1(%arg0: i32, %arg1: i32) -> (i32, i32) {
    %c1_i32 = arith.constant 1 : i32
    %0 = arith.muli %arg0, %c1_i32 : i32
    %1 = arith.addi %0, %arg1 : i32
    %c0_i32 = arith.constant 0 : i32
    %2 = arith.minsi %1, %c0_i32 : i32
    %c0_i32_0 = arith.constant 0 : i32
    %c0_i32_1 = arith.constant 0 : i32
    return %2, %c0_i32_0 : i32, i32
  }
  func.func @transform_2(%arg0: i32, %arg1: i32) -> (i32, i32) {
    %c0_i32 = arith.constant 0 : i32
    %c0_i32_0 = arith.constant 0 : i32
    return %arg0, %c0_i32 : i32, i32
  }
}

</mosaic_0001>

<llo_original>
// kernel: tpu_custom_call.1
$region0: #{tpu_custom_call.1}
  #allocation0 [shape = 'u32[]', space=smem, size = 0x4, offset = 0x4, fixed_abs, tag = 'smem constant byte address 0x4 - core index']
  #allocation1 [shape = 'u32[144,128]{1,0:T(1,128)}', space=vmem, size = 0x12000, scoped, tag = 'internal scratch']
  #allocation2 [shape = 'f32[16,128]{1,0:T(8,128)}', space=vmem, size = 0x2000, scoped, tag = 'scratch operand']
  %s0 = inlined_call_operand.hbm [shape: f32[16,128], index: 0, kind: input, shape index: {}]
  %s1 = inlined_call_operand.hbm [shape: f32[16,128], index: 1, kind: input, shape index: {}]
  %s2 = inlined_call_operand.hbm [shape: f32[1,128], index: 2, kind: output, shape index: {}]
  %s3 = sld [smem:[#allocation0]]
  $region34: #{tpu_custom_call.1} parent=0
    _
  %s5 = ssub.s32 1, %s3
  %s6 = scalar_select 0, %s5, %s3
  $region1: #{tpu_custom_call.1} parent=0
    #allocation3 [shape = 'u8[8192]{0}', space=vmem, size = 0x2000, scoped, tag = 'input window, operand 0, single buffered']
    #allocation4 [shape = 's32[1]{0}', space=sflag, size = 0x4, scoped, tag = 'scoped memory for tpu_custom_call.1']
    #allocation5 [shape = 's32[1]{0}', space=sflag, size = 0x4, scoped, tag = 'scoped memory for tpu_custom_call.1']
    #allocation6 [shape = 'u8[8192]{0}', space=vmem, size = 0x2000, scoped, tag = 'input window, operand 1, single buffered']
    #allocation7 [shape = 's32[1]{0}', space=sflag, size = 0x4, scoped, tag = 'scoped memory for tpu_custom_call.1']
    #allocation8 [shape = 'u8[512]{0}', space=vmem, size = 0x400, scoped, tag = 'output window, operand 0, single buffered']
    %7 = vsyncpa [#allocation4], 0
    %8 = vsyncpa [#allocation7], 0
    %9 = vsyncpa [#allocation5], 0
    // Predicated region
    $region2: #{tpu_custom_call.1} parent=1 // pred_check
      _
    $region3: #{tpu_custom_call.1} parent=1 // pred_check_branch
      %11 = sbr.rel (0) target = $region5
    $region4: #{tpu_custom_call.1} parent=1 // pred_region
      %s12 = sadd.s32 0, 0
      %p13 = scmp.lt.s32.totalorder %s12, 0
      %s14 = scalar_select %p13, %s12, 0
      %s15 = smul.u32 2, %s14
      %s17 = ssub.s32 256, 256
      %18 = vsyncadd [#allocation4], %s17
      %s19 = smul.addr %s15, 128
      %s20 = scalar_lea.hbm %s0, %s19
      %s21 = sshll.u32 [#allocation3], 4
      %s22 = int_to_ptr.vmem [resolvable:$true] %s21
      %27 = dma.hbm_to_vmem [thread:$0]  %s20, 256, %s22, [#allocation4], 128, 128, 8
    $region5: #{tpu_custom_call.1} parent=1 // pred_fallthru
      _
    // Predicated region
    $region6: #{tpu_custom_call.1} parent=1 // pred_check
      _
    $region7: #{tpu_custom_call.1} parent=1 // pred_check_branch
      %29 = sbr.rel (0) target = $region9
    $region8: #{tpu_custom_call.1} parent=1 // pred_region
      %s30 = sadd.s32 0, 0
      %p31 = scmp.lt.s32.totalorder %s30, 0
      %s32 = scalar_select %p31, %s30, 0
      %s33 = smul.u32 2, %s32
      %s35 = ssub.s32 256, 256
      %36 = vsyncadd [#allocation7], %s35
      %s37 = smul.addr %s33, 128
      %s38 = scalar_lea.hbm %s1, %s37
      %s39 = sshll.u32 [#allocation6], 4
      %s40 = int_to_ptr.vmem [resolvable:$true] %s39
      %45 = dma.hbm_to_vmem [thread:$0]  %s38, 256, %s40, [#allocation7], 128, 128, 8
    $region9: #{tpu_custom_call.1} parent=1 // pred_fallthru
      _
    // Predicated region
    $region10: #{tpu_custom_call.1} parent=1 // pred_check
      _
    $region11: #{tpu_custom_call.1} parent=1 // pred_check_branch
      %47 = sbr.rel (0) target = $region13
    $region12: #{tpu_custom_call.1} parent=1 // pred_region
      %48 = dma.done [#allocation4], 256
    $region13: #{tpu_custom_call.1} parent=1 // pred_fallthru
      _
    // Predicated region
    $region14: #{tpu_custom_call.1} parent=1 // pred_check
      _
    $region15: #{tpu_custom_call.1} parent=1 // pred_check_branch
      %50 = sbr.rel (0) target = $region17
    $region16: #{tpu_custom_call.1} parent=1 // pred_region
      %51 = dma.done [#allocation7], 256
    $region17: #{tpu_custom_call.1} parent=1 // pred_fallthru
      _
    %s52 = sadd.s32 0, 0
    %p53 = scmp.lt.s32.totalorder %s52, 0
    %s54 = scalar_select %p53, %s52, 0
    %s55 = smul.u32 2, %s54
    %s56 = sadd.s32 0, 0
    %p57 = scmp.lt.s32.totalorder %s56, 0
    %s58 = scalar_select %p57, %s56, 0
    %s59 = smul.u32 2, %s58
    %p60 = scmp.eq.s32.totalorder 0, 0
    // Predicated region
    $region18: #{tpu_custom_call.1} parent=1 // pred_check
      %p61 = pneg %p60
    $region19: #{tpu_custom_call.1} parent=1 // pred_check_branch
      %63 = sbr.rel (%p61) target = $region21
    $region20: #{tpu_custom_call.1} parent=1 // pred_region
      %64 = vst [vmem:[#allocation2] sm:$0xff] 0.0
      %65 = vst [vmem:[#allocation2 + $0x8] sm:$0xff] 0.0
    $region21: #{tpu_custom_call.1} parent=1 // pred_fallthru
      _
    %s66 = sadd.s32 0, 0
    %s67 = smul.u32 %s66, 16
    %v68 = vlaneseq
    %v69 = vshrl.u32 %v68, 7
    %v70 = vadd.s32 %v69, 8
    %v71 = vstv %s67
    %v72 = vadd.s32 %v71, %v69
    %v73 = vadd.s32 %v71, %v70
    %vm74 = vcmp.lt.s32.totalorder %v72, 16
    %vm75 = vcmp.lt.s32.totalorder %v73, 16
    %v76 = vld [vmem:[#allocation3] sm:$0xff]
    %v77 = vld [vmem:[#allocation3 + $0x8] sm:$0xff]
    %v78 = vld [vmem:[#allocation6] sm:$0xff]
    %v79 = vld [vmem:[#allocation6 + $0x8] sm:$0xff]
    %v80 = vsub.f32 %v76, %v78
    %v81 = vsub.f32 %v77, %v79
    %v82 = vld [vmem:[#allocation2] sm:$0xff]
    %v83 = vld [vmem:[#allocation2 + $0x8] sm:$0xff]
    %v84 = vmul.f32 %v80, %v80
    %v85 = vmul.f32 %v81, %v81
    %v86 = vsel %vm74, %v84, 0.0
    %v87 = vsel %vm75, %v85, 0.0
    %v88 = vadd.f32 %v82, %v86
    %v89 = vadd.f32 %v83, %v87
    %90 = vst [vmem:[#allocation2] sm:$0xff] %v88
    %91 = vst [vmem:[#allocation2 + $0x8] sm:$0xff] %v89
    // Predicated region
    $region22: #{tpu_custom_call.1} parent=1 // pred_check
      %p92 = pneg %p60
    $region23: #{tpu_custom_call.1} parent=1 // pred_check_branch
      %94 = sbr.rel (%p92) target = $region25
    $region24: #{tpu_custom_call.1} parent=1 // pred_region
      %v95 = vld [vmem:[#allocation2] sm:$0xff]
      %v96 = vld [vmem:[#allocation2 + $0x8] sm:$0xff]
      %v97 = vadd.f32 %v95, %v96
      %v98 = vrot.slane %v97, 4
      %v99 = vadd.f32 %v97, %v98
      %v100 = vrot.slane %v99, 2
      %v101 = vadd.f32 %v99, %v100
      %v102 = vrot.slane %v101, 1
      %v103 = vadd.f32 %v101, %v102
      %104 = vst [vmem:[#allocation8] sm:$0x1] %v103
    $region25: #{tpu_custom_call.1} parent=1 // pred_fallthru
      _
    // Predicated region
    $region26: #{tpu_custom_call.1} parent=1 // pred_check
      _
    $region27: #{tpu_custom_call.1} parent=1 // pred_check_branch
      %106 = sbr.rel (0) target = $region29
    $region28: #{tpu_custom_call.1} parent=1 // pred_region
      %s108 = ssub.s32 16, 16
      %109 = vsyncadd [#allocation5], %s108
      %s111 = sshll.u32 [#allocation8], 4
      %s112 = int_to_ptr.vmem [resolvable:$true] %s111
      %114 = dma.vmem_to_hbm [thread:$0]  %s112, 16, %s2, [#allocation5]
    $region29: #{tpu_custom_call.1} parent=1 // pred_fallthru
      _
    // Predicated region
    $region30: #{tpu_custom_call.1} parent=1 // pred_check
      _
    $region31: #{tpu_custom_call.1} parent=1 // pred_check_branch
      %116 = sbr.rel (0) target = $region33
    $region32: #{tpu_custom_call.1} parent=1 // pred_region
      %117 = dma.done [#allocation5], 16
    $region33: #{tpu_custom_call.1} parent=1 // pred_fallthru
      _
    %118 = vsyncpa [#allocation4], 1
    %119 = vsyncpa [#allocation7], 1
    %120 = vsyncpa [#allocation5], 1

</llo_original>
